<compile_context>
chip_gen: v5e
topology: v5e:2x2
jax: 0.10.0
libtpu: 0.0.40
codegen_flags: <defaults>
</compile_context>

<pallas_src>
import functools
import math

import jax
import jax.numpy as jnp
from jax.experimental import pallas as pl
from jax.experimental.pallas import tpu as pltpu

LANE = 128


# --------------------------------------------------------------------------
# small helpers
# --------------------------------------------------------------------------
def _round_up(x, m):
    return ((x + m - 1) // m) * m


def _pick_div_tile(dim, cap, unit=LANE):
    """Largest multiple of `unit` that divides `dim` and is <= cap (dim % unit == 0)."""
    t = (min(cap, dim) // unit) * unit
    while dim % t:
        t -= unit
    return t


def _detect_vmem_limit():
    """~3/4 of physical VMEM: ~48 MiB on v7x, ~96 MiB on v5e/v6e."""
    try:
        cap = int(pltpu.get_tpu_info().vmem_capacity_bytes)
        return min(cap * 3 // 4, 96 * 1024 * 1024)
    except Exception:  # pragma: no cover - conservative default
        return 48 * 1024 * 1024


_VMEM_LIMIT = _detect_vmem_limit()


def _cparams(dimension_semantics):
    return pltpu.CompilerParams(dimension_semantics=dimension_semantics,
                                vmem_limit_bytes=_VMEM_LIMIT)


# --------------------------------------------------------------------------
# Tiled bf16 matmul (MXU) with fp32 accumulation, exact (masked) output shape
# --------------------------------------------------------------------------
def _mm_kernel(a_ref, b_ref, o_ref, acc_ref, *, relu):
    @pl.when(pl.program_id(2) == 0)
    def _():
        acc_ref[...] = jnp.zeros_like(acc_ref)

    acc_ref[...] += jnp.dot(a_ref[...], b_ref[...],
                            preferred_element_type=jnp.float32)

    @pl.when(pl.program_id(2) == pl.num_programs(2) - 1)
    def _():
        r = acc_ref[...]
        if relu:
            r = jnp.maximum(r, 0.0)
        o_ref[...] = r.astype(o_ref.dtype)


def pallas_matmul(a, b, relu=False, out_dtype=jnp.bfloat16, n_out=None):
    """(M, K) @ (Kp, Np) -> (M, n_out).

    `b` is a pre-padded / pre-cast bf16 weight (K == Kp, Np multiple of 128).
    The output is written at its exact logical shape (masked edge stores), so
    no post-kernel crop pass is needed.
    """
    M, K = a.shape
    Kp, Np = b.shape
    assert K == Kp and Kp % LANE == 0 and Np % LANE == 0
    if n_out is None:
        n_out = Np
    a = a.astype(jnp.bfloat16)
    tm = min(512, _round_up(M, 16))          # multiple of 16: bf16 sublane packing
    tn = _pick_div_tile(Np, 512)
    tk = _pick_div_tile(Kp, 1024)
    return pl.pallas_call(
        functools.partial(_mm_kernel, relu=relu),
        out_shape=jax.ShapeDtypeStruct((M, n_out), out_dtype),
        grid=(pl.cdiv(M, tm), Np // tn, Kp // tk),
        in_specs=[pl.BlockSpec((tm, tk), lambda i, j, k: (i, k)),
                  pl.BlockSpec((tk, tn), lambda i, j, k: (k, j))],
        out_specs=pl.BlockSpec((tm, tn), lambda i, j, k: (i, j)),
        scratch_shapes=[pltpu.VMEM((tm, tn), jnp.float32)],
        compiler_params=_cparams(("parallel", "parallel", "arbitrary")),
    )(a, b)


def conv1x1_nhwc(x, w, relu=False, out_dtype=jnp.bfloat16):
    # x: (N, H, W, Cin), w: (Cin, Cout) pre-padded bf16
    N, H, W, Cin = x.shape
    out = pallas_matmul(x.reshape(N * H * W, Cin), w, relu=relu, out_dtype=out_dtype)
    return out.reshape(N, H, W, -1)


# --------------------------------------------------------------------------
# 3x3 conv (stride 1) as one Pallas kernel: 9 shifted flat MXU matmuls
# --------------------------------------------------------------------------
def _conv3x3_kernel(*refs, wp, ho, wo, relu, has_bias, has_res):
    x_ref, w_ref = refs[0], refs[1]
    i = 2
    bias_ref = res_ref = None
    if has_bias:
        bias_ref, i = refs[i], i + 1
    if has_res:
        res_ref, i = refs[i], i + 1
    o_ref = refs[i]

    n_out = ho * wp
    bias = bias_ref[0] if has_bias else None            # (1, Cin) fp32
    acc = None
    for ky in range(3):
        for kx in range(3):
            a = x_ref[0, pl.ds(ky * wp + kx, n_out), :]  # (n_out, Cin) bf16
            if has_bias:
                # fused conv1 bias + ReLU (input activation of conv2)
                a = jnp.maximum(a.astype(jnp.float32) + bias, 0.0).astype(jnp.bfloat16)
            d = jnp.dot(a, w_ref[ky * 3 + kx], preferred_element_type=jnp.float32)
            acc = d if acc is None else acc + d          # value accumulator (no VMEM RMW)
    if relu:
        acc = jnp.maximum(acc, 0.0)
    # store only the valid columns of every output row: the flat-shift junk
    # columns are dropped in-kernel instead of being cropped in HBM afterwards
    for r in range(ho):
        row = acc[r * wp:r * wp + wo, :]
        if has_res:
            row = row + res_ref[0, r, :, :].astype(jnp.float32)   # fused residual add
        o_ref[0, r, :, :] = row.astype(o_ref.dtype)


def conv3x3_nhwc(x, w_taps, padding, relu=False, bias=None, residual=None,
                 out_dtype=jnp.bfloat16):
    """x: (N, H, W, Cin); w_taps: (9, Cin, Cout) bf16 (tap = ky*3+kx), lane padded.

    The spatially padded input is flattened over (H, W); each of the 9 taps is a
    contiguous shifted window of the flat array, so the conv is 9 plain 2-D MXU
    matmuls (no im2col tensor).  Optional fusions: per-ROI input bias + ReLU
    (conv1/conv2 path, the bg block is shared across ROIs), residual add on the
    output (HR2O "x + conv(virt)").
    """
    N, H, W, Cin = x.shape
    Cout = w_taps.shape[-1]
    p = padding
    hpad, wpad = H + 2 * p, W + 2 * p
    ho, wo = hpad - 2, wpad - 2
    # one extra zero row at the bottom keeps every shifted window in-bounds
    xp = jnp.pad(x, ((0, 0), (p, p + 1), (p, p), (0, 0)))
    lin = (hpad + 1) * wpad
    xf = xp.reshape(N, lin, Cin).astype(jnp.bfloat16)

    has_bias = bias is not None
    has_res = residual is not None
    R = bias.shape[0] if has_bias else N
    shared_x = has_bias and N == 1                     # bg features shared by all ROIs
    tco = _pick_div_tile(Cout, 512)                    # Cout tiling: v7x VMEM headroom

    x_map = (lambda j, n: (0, 0, 0)) if shared_x else (lambda j, n: (n, 0, 0))
    in_specs = [pl.BlockSpec((1, lin, Cin), x_map),
                pl.BlockSpec((9, Cin, tco), lambda j, n: (0, 0, j))]
    args = [xf, w_taps]
    if has_bias:
        in_specs.append(pl.BlockSpec((1, 1, Cin), lambda j, n: (n, 0, 0)))
        args.append(bias.reshape(R, 1, Cin).astype(jnp.float32))
    if has_res:
        in_specs.append(pl.BlockSpec((1, ho, wo, tco), lambda j, n: (n, 0, 0, j)))
        args.append(residual)

    kern = functools.partial(_conv3x3_kernel, wp=wpad, ho=ho, wo=wo, relu=relu,
                             has_bias=has_bias, has_res=has_res)
    return pl.pallas_call(
        kern,
        out_shape=jax.ShapeDtypeStruct((R, ho, wo, Cout), out_dtype),
        grid=(Cout // tco, R),
        in_specs=in_specs,
        out_specs=pl.BlockSpec((1, ho, wo, tco), lambda j, n: (n, 0, 0, j)),
        compiler_params=_cparams(("parallel", "parallel")),
    )(*args)


# --------------------------------------------------------------------------
# HR2O attention: per spatial position, attention across the N ROIs
# --------------------------------------------------------------------------
def _hr2o_attn_kernel(qkv_ref, o_ref, *, c, scale):
    qkv = qkv_ref[...]                                   # (tS, N, 3C) bf16
    q = qkv[:, :, :c]                                    # static lane slices
    k = qkv[:, :, c:2 * c]
    v = qkv[:, :, 2 * c:]
    att = jnp.einsum('snc,smc->snm', q, k,
                     preferred_element_type=jnp.float32) * scale
    att = att - jnp.max(att, axis=-1, keepdims=True)
    e = jnp.exp(att)
    inv = pl.reciprocal(jnp.sum(e, axis=-1, keepdims=True), approx=True)
    p = (e * inv).astype(v.dtype)
    o_ref[...] = jnp.einsum('snm,smc->snc', p, v,
                            preferred_element_type=jnp.float32).astype(o_ref.dtype)


def hr2o_attention(qkv, c, hidden):
    # qkv: (S, N, 3*Cp) bf16 -> (S, N, Cp) bf16
    S, N, C3 = qkv.shape
    tS = min(128, S)        # 128 keeps v7x (64 MiB VMEM) comfortable at real sizes
    return pl.pallas_call(
        functools.partial(_hr2o_attn_kernel, c=c, scale=1.0 / float(hidden) ** 0.5),
        out_shape=jax.ShapeDtypeStruct((S, N, c), jnp.bfloat16),
        grid=(pl.cdiv(S, tS),),
        in_specs=[pl.BlockSpec((tS, N, C3), lambda i: (i, 0, 0))],
        out_specs=pl.BlockSpec((tS, N, c), lambda i: (i, 0, 0)),
        compiler_params=_cparams(("parallel",)),
    )(qkv)


# --------------------------------------------------------------------------
# GroupNorm(1 group) + ReLU, channels-last (padded channels are exact zeros)
# --------------------------------------------------------------------------
def _gn_relu_kernel(x_ref, g_ref, b_ref, o_ref, *, n_valid):
    x = x_ref[0].astype(jnp.float32)            # (S, Cp)
    # padded channels are exactly zero, so they do not perturb the sums;
    # n_valid counts only the real hidden channels (biased var, PyTorch GN).
    mean = jnp.sum(x) / n_valid
    var = jnp.sum(x * x) / n_valid - mean * mean
    y = (x - mean) * jax.lax.rsqrt(var + 1e-5)
    y = y * g_ref[...] + b_ref[...]
    o_ref[0] = jnp.maximum(y, 0.0).astype(o_ref.dtype)


def groupnorm_relu(x, gamma, beta, hidden):
    # x: (N, S, Cp) bf16; gamma/beta: (1, Cp) fp32 (zero in padded channels)
    N, S, Cp = x.shape
    return pl.pallas_call(
        functools.partial(_gn_relu_kernel, n_valid=float(S * hidden)),
        out_shape=jax.ShapeDtypeStruct((N, S, Cp), jnp.bfloat16),
        grid=(N,),
        in_specs=[pl.BlockSpec((1, S, Cp), lambda n: (n, 0, 0)),
                  pl.BlockSpec((1, Cp), lambda n: (0, 0)),
                  pl.BlockSpec((1, Cp), lambda n: (0, 0))],
        out_specs=pl.BlockSpec((1, S, Cp), lambda n: (n, 0, 0)),
        compiler_params=_cparams(("parallel",)),
    )(x, gamma, beta)


# --------------------------------------------------------------------------
# non-Pallas glue: maxpool, roi_align (bilinear gather)
# --------------------------------------------------------------------------
def maxpool2d_nhwc(x, kernel, stride, padding):
    init = jnp.array(-jnp.inf, dtype=x.dtype)
    return jax.lax.reduce_window(
        x, init, jax.lax.max,
        window_dimensions=(1, kernel, kernel, 1),
        window_strides=(1, stride, stride, 1),
        padding=((0, 0), (padding, padding), (padding, padding), (0, 0)))


def _interp_coords(c, size):
    valid = (c >= -1.0) & (c <= float(size))
    c = jnp.maximum(c, 0.0)
    lo = jnp.floor(c).astype(jnp.int32)
    at_edge = lo >= size - 1
    lo = jnp.where(at_edge, size - 1, lo)
    hi = jnp.where(at_edge, size - 1, lo + 1)
    frac = jnp.where(at_edge, 0.0, c - lo.astype(c.dtype))
    return lo, hi, frac, valid


def bilinear_sample_nhwc(feat, ys, xs):
    # feat: (H, W, C); ys: (Ny,); xs: (Nx,) -> (Ny, Nx, C) fp32
    H, W, _ = feat.shape
    yl, yh, ly, yv = _interp_coords(ys, H)
    xl, xh, lx, xv = _interp_coords(xs, W)
    hy, hx = 1.0 - ly, 1.0 - lx

    def g(yi, xi):
        return feat[yi[:, None], xi[None, :], :]

    val = ((hy[:, None] * hx[None, :])[..., None] * g(yl, xl)
           + (hy[:, None] * lx[None, :])[..., None] * g(yl, xh)
           + (ly[:, None] * hx[None, :])[..., None] * g(yh, xl)
           + (ly[:, None] * lx[None, :])[..., None] * g(yh, xh))
    mask = (yv[:, None] & xv[None, :]).astype(val.dtype)[..., None]
    return val * mask


def roi_align_one_nhwc(feat, roi, out_size, sampling_ratio=2):
    # TODO(synk): torchvision roi_align uses adaptive sampling_ratio=ceil(bin size)
    #             when sampling_ratio=-1; a fixed 2x2 sub-sample grid is used here.
    x1, y1, x2, y2 = roi[1], roi[2], roi[3], roi[4]
    roi_w = jnp.maximum(x2 - x1, 1.0)
    roi_h = jnp.maximum(y2 - y1, 1.0)
    bin_w = roi_w / out_size
    bin_h = roi_h / out_size
    idx = jnp.arange(out_size * sampling_ratio)
    bin_i = (idx // sampling_ratio).astype(jnp.float32)
    sub_i = (idx % sampling_ratio).astype(jnp.float32)
    ys = y1 + bin_i * bin_h + (sub_i + 0.5) * bin_h / sampling_ratio
    xs = x1 + bin_i * bin_w + (sub_i + 0.5) * bin_w / sampling_ratio
    s = bilinear_sample_nhwc(feat, ys, xs)
    C = s.shape[-1]
    s = s.reshape(out_size, sampling_ratio, out_size, sampling_ratio, C)
    return s.mean(axis=(1, 3))                     # (7, 7, C)


# --------------------------------------------------------------------------
# HR2O block + ACARHead forward
# --------------------------------------------------------------------------
def hr2o_forward(x, lp, hidden):
    # x: (N, H, W, Cp) bf16
    N, H, W, Cp = x.shape
    S = H * W
    qkv = conv3x3_nhwc(x, lp['w_qkv'], padding=1)               # fused q/k/v conv
    # TODO(synk): one bf16 transpose each way remains; absorbing them needs an
    #             s-major conv output layout or an in-kernel (1,0,2) transpose.
    qkv = jnp.transpose(qkv.reshape(N, S, 3 * Cp), (1, 0, 2))   # (S, N, 3Cp)
    virt = hr2o_attention(qkv, Cp, hidden)                      # (S, N, Cp) bf16
    virt = jnp.transpose(virt, (1, 0, 2))                       # (N, S, Cp)
    virt = groupnorm_relu(virt, lp['gn_gamma'], lp['gn_beta'], hidden)
    virt = virt.reshape(N, H, W, Cp)
    # conv(virt) + residual fused in the conv kernel; Dropout(0.2) eval == identity
    return conv3x3_nhwc(virt, lp['w_out'], padding=1, residual=x)


def _prepare_params(params):
    """PyTorch-layout weights -> lane-padded bf16 kernel layouts (done once)."""
    width = params['conv_reduce_w'].shape[1]
    reduce_dim = params['conv_reduce_w'].shape[0]
    hidden = params['conv2_w'].shape[0]
    num_classes = params['fc2_w'].shape[0]
    wpd = _round_up(width, LANE)
    rp = _round_up(reduce_dim, LANE)
    hp = _round_up(hidden, LANE)

    def pad_mm(w_t, kp, np_):                  # (K, N) -> (kp, np_) bf16 zero-padded
        k, n = w_t.shape
        return jnp.pad(w_t, ((0, kp - k), (0, np_ - n))).astype(jnp.bfloat16)

    def taps(w, cin_p, cout_p):                # torch (Cout, Cin, 3, 3) -> (9, cin_p, cout_p)
        cout, cin = w.shape[0], w.shape[1]
        t = jnp.transpose(w, (2, 3, 1, 0)).reshape(9, cin, cout)
        return jnp.pad(t, ((0, 0), (0, cin_p - cin), (0, cout_p - cout))).astype(jnp.bfloat16)

    fc2_t = jnp.transpose(params['fc2_w'])     # (2*hidden, classes)
    fc2_a = jnp.pad(fc2_t[:hidden], ((0, hp - hidden), (0, 0)))
    fc2_b = jnp.pad(fc2_t[hidden:], ((0, hp - hidden), (0, 0)))
    ncp = _round_up(num_classes, LANE)
    fc2 = jnp.pad(jnp.concatenate([fc2_a, fc2_b], axis=0),
                  ((0, 0), (0, ncp - num_classes))).astype(jnp.bfloat16)

    pp = {
        'width': width, 'width_p': wpd, 'reduce_p': rp,
        'hidden': hidden, 'hidden_p': hp, 'classes': num_classes,
        'conv_reduce': pad_mm(jnp.transpose(params['conv_reduce_w']), wpd, rp),
        'conv1_bg': pad_mm(jnp.transpose(params['conv1_w'][:, :reduce_dim]), rp, hp),
        'conv1_actor': pad_mm(jnp.transpose(params['conv1_w'][:, reduce_dim:]), rp, hp),
        'conv2': taps(params['conv2_w'], hp, hp),
        'fc1': pad_mm(jnp.transpose(params['fc1_w']), rp, hp),
        'fc2': fc2,
        'hr2o': [],
    }
    for lp in params['hr2o']:
        w_qkv = jnp.concatenate([taps(lp['q'], hp, hp),
                                 taps(lp['k'], hp, hp),
                                 taps(lp['v'], hp, hp)], axis=-1)    # (9, hp, 3*hp)
        pp['hr2o'].append({
            'w_qkv': w_qkv,
            'w_out': taps(lp['conv'], hp, hp),
            'gn_gamma': jnp.pad(lp['gn_gamma'], (0, hp - hidden)).reshape(1, hp).astype(jnp.float32),
            'gn_beta': jnp.pad(lp['gn_beta'], (0, hp - hidden)).reshape(1, hp).astype(jnp.float32),
        })
    return pp


def acar_head_forward(params, data, roi_spatial=7):
    pp = _prepare_params(params)

    feats_in = data['features']
    feats_list = feats_in if isinstance(feats_in, list) else [feats_in]
    h, w = feats_list[0].shape[3], feats_list[0].shape[4]
    # AdaptiveAvgPool3d((1, h, w)) == temporal mean
    feats = jnp.concatenate([f.mean(axis=2) for f in feats_list], axis=1)   # (B, width, h, w)
    feats = jnp.transpose(feats, (0, 2, 3, 1))                              # NHWC from here on
    if pp['width_p'] != pp['width']:
        feats = jnp.pad(feats, ((0, 0), (0, 0), (0, 0), (0, pp['width_p'] - pp['width'])))
    feats = conv1x1_nhwc(feats, pp['conv_reduce'])                          # (B, h, w, Rp) bf16

    rois = data['rois'] * jnp.array([1.0, w, h, w, h], jnp.float32)
    roi_batch = jnp.asarray(data['roi_batch'], jnp.int32)
    batch_feats = feats[roi_batch]                                          # (R, h, w, Rp)
    ra = jax.vmap(lambda f, r: roi_align_one_nhwc(f, r, roi_spatial))(batch_feats, rois)
    roi_feats = jnp.max(ra, axis=(1, 2))                                    # roi_maxpool -> (R, Rp)

    # conv1(cat([bg, tiled_actor])) == bg @ W_bg + actor @ W_actor (bias-free 1x1);
    # both halves computed batched (all images / all ROIs) in one matmul each.
    bg_proj_all = conv1x1_nhwc(feats, pp['conv1_bg'])                       # (B, h, w, Hp) bf16
    actor_bias_all = pallas_matmul(roi_feats, pp['conv1_actor'],
                                   out_dtype=jnp.float32)                   # (R, Hp) fp32

    roi_ids = data['roi_ids']
    sizes = data['sizes_before_padding']
    high_order = []
    # TODO(synk): per-image Python loop kept because eff_h/eff_w are data dependent;
    #             a padded+masked batched path (masking through attention and GN)
    #             would remove the per-size kernel launches / recompiles.
    for idx in range(feats.shape[0]):
        n_rois = roi_ids[idx + 1] - roi_ids[idx]
        if n_rois == 0:
            continue
        eff_h = math.ceil(h * sizes[idx][1])
        eff_w = math.ceil(w * sizes[idx][0])
        bg = bg_proj_all[idx:idx + 1, :eff_h, :eff_w, :]                    # (1, eh, ew, Hp)
        bias = actor_bias_all[roi_ids[idx]:roi_ids[idx + 1]]                # (n, Hp)
        # fused: relu(bg + actor_bias) -> conv2 (3x3 valid) -> relu, one kernel
        interact = conv3x3_nhwc(bg, pp['conv2'], padding=0, relu=True, bias=bias)
        interact = maxpool2d_nhwc(interact, 3, 2, 1)                        # 'max2x2' downsample
        for lp in pp['hr2o']:
            interact = hr2o_forward(interact, lp, pp['hidden'])
        high_order.append(interact.astype(jnp.float32).mean(axis=(1, 2)))   # AdaptiveAvgPool2d(1)
    high_order = jnp.concatenate(high_order, axis=0)                        # (R, Hp)

    out = pallas_matmul(roi_feats, pp['fc1'], relu=True, out_dtype=jnp.float32)
    out = jnp.concatenate([out, high_order], axis=1)                        # (R, 2*Hp)
    # ACARHead dropout=0.0 -> dp is None
    out = pallas_matmul(out, pp['fc2'], out_dtype=jnp.float32, n_out=pp['classes'])
    return {'outputs': out}


# --------------------------------------------------------------------------
# Deterministic parameter init + example run
# --------------------------------------------------------------------------
def _init(key, shape, scale=0.05):
    return scale * jax.random.normal(key, shape, jnp.float32)


if __name__ == "__main__":
    # small config consistent with the module
    B, width, T, H, W = 2, 8, 4, 16, 16
    reduce_dim, hidden_dim, num_classes, depth, roi_spatial = 16, 16, 10, 2, 7

    root = jax.random.PRNGKey(0)
    keys = jax.random.split(root, 32)

    params = {
        'conv_reduce_w': _init(keys[0], (reduce_dim, width)),
        'conv1_w': _init(keys[1], (hidden_dim, reduce_dim * 2)),
        'conv2_w': _init(keys[2], (hidden_dim, hidden_dim, 3, 3)),
        'fc1_w': _init(keys[3], (hidden_dim, reduce_dim)),
        'fc2_w': _init(keys[4], (num_classes, hidden_dim * 2)),
        'hr2o': [],
    }
    for d in range(depth):
        base = 5 + 4 * d
        params['hr2o'].append({
            'q': _init(keys[base + 0], (hidden_dim, hidden_dim, 3, 3)),
            'k': _init(keys[base + 1], (hidden_dim, hidden_dim, 3, 3)),
            'v': _init(keys[base + 2], (hidden_dim, hidden_dim, 3, 3)),
            'conv': _init(keys[base + 3], (hidden_dim, hidden_dim, 3, 3)),
            'gn_gamma': jnp.ones((hidden_dim,), jnp.float32),
            'gn_beta': jnp.zeros((hidden_dim,), jnp.float32),
        })

    features = jax.random.normal(keys[30], (B, width, T, H, W), jnp.float32)
    rois = jnp.array([[0.0, 0.10, 0.10, 0.80, 0.90],
                      [0.0, 0.30, 0.20, 0.90, 0.70],
                      [1.0, 0.00, 0.00, 1.00, 1.00]], jnp.float32)
    data = {
        'features': features,
        'rois': rois,
        'roi_batch': [0, 0, 1],
        'num_rois': 3,
        'roi_ids': [0, 2, 3],
        'sizes_before_padding': [[1.0, 1.0], [0.875, 1.0]],
    }

    result = acar_head_forward(params, data, roi_spatial=roi_spatial)
    out = jax.block_until_ready(result['outputs'])
    assert out.shape == (data['num_rois'], num_classes)
    assert bool(jnp.all(jnp.isfinite(out)))
    print("KERNEL_OK")
</pallas_src>

<mosaic_0001>
module attributes {stable_mosaic.version = 11 : i64} {
  func.func @_mm_kernel(%arg0: i32, %arg1: i32, %arg2: i32, %arg3: memref<512x128xbf16, #tpu.memory_space<vmem>>, %arg4: memref<128x128xbf16, #tpu.memory_space<vmem>>, %arg5: memref<512x128xbf16, #tpu.memory_space<vmem>>, %arg6: memref<512x128xf32, #tpu.memory_space<vmem>>) attributes {dimension_semantics = [#tpu.dimension_semantics<parallel>, #tpu.dimension_semantics<parallel>, #tpu.dimension_semantics<arbitrary>], iteration_bounds = array<i64: 1, 1, 1>, scalar_prefetch = 0 : i64, scratch_operands = 1 : i64, tpu.core_type = #tpu.core_type<tc>, window_params = [{transform_indices = @transform_0, window_bounds = array<i64: 512, 128>}, {transform_indices = @transform_1, window_bounds = array<i64: 128, 128>}, {transform_indices = @transform_2, window_bounds = array<i64: 512, 128>}]} {
    %c0_i32 = arith.constant 0 : i32
    %0 = arith.cmpi eq, %arg2, %c0_i32 : i32
    %1 = arith.extui %0 : i1 to i32
    %c0_i32_0 = arith.constant 0 : i32
    %2 = arith.cmpi ne, %1, %c0_i32_0 : i32
    scf.if %2 {
      %cst_10 = arith.constant 0.000000e+00 : f32
      %12 = vector.broadcast %cst_10 : f32 to vector<512x128xf32>
      %c0_11 = arith.constant 0 : index
      %c0_12 = arith.constant 0 : index
      %13 = vector.load %arg6[%c0_11, %c0_12] : memref<512x128xf32, #tpu.memory_space<vmem>>, vector<512x128xf32>
      tpu.vector_store %arg6[%c0_11, %c0_12], %12 {strides = array<i32>} : memref<512x128xf32, #tpu.memory_space<vmem>>, vector<512x128xf32>,
    } else {
    }
    %c0 = arith.constant 0 : index
    %c0_1 = arith.constant 0 : index
    %3 = vector.load %arg6[%c0, %c0_1] : memref<512x128xf32, #tpu.memory_space<vmem>>, vector<512x128xf32>
    %c0_2 = arith.constant 0 : index
    %c0_3 = arith.constant 0 : index
    %4 = vector.load %arg3[%c0_2, %c0_3] : memref<512x128xbf16, #tpu.memory_space<vmem>>, vector<512x128xbf16>
    %c0_4 = arith.constant 0 : index
    %c0_5 = arith.constant 0 : index
    %5 = vector.load %arg4[%c0_4, %c0_5] : memref<128x128xbf16, #tpu.memory_space<vmem>>, vector<128x128xbf16>
    %cst = arith.constant dense<0.000000e+00> : vector<512x128xf32>
    %6 = tpu.matmul %4, %5, %cst {dimension_numbers = #tpu.dot_dimension_numbers<[1], [0], [0], [1], [0, 0, 1, 1], [], []>} : vector<512x128xbf16>, vector<128x128xbf16>, vector<512x128xf32> -> vector<512x128xf32>
    %7 = arith.addf %3, %6 : vector<512x128xf32>
    %c0_6 = arith.constant 0 : index
    %c0_7 = arith.constant 0 : index
    %8 = vector.load %arg6[%c0_6, %c0_7] : memref<512x128xf32, #tpu.memory_space<vmem>>, vector<512x128xf32>
    tpu.vector_store %arg6[%c0_6, %c0_7], %7 {strides = array<i32>} : memref<512x128xf32, #tpu.memory_space<vmem>>, vector<512x128xf32>,
    %c0_i32_8 = arith.constant 0 : i32
    %9 = arith.cmpi eq, %arg2, %c0_i32_8 : i32
    %10 = arith.extui %9 : i1 to i32
    %c0_i32_9 = arith.constant 0 : i32
    %11 = arith.cmpi ne, %10, %c0_i32_9 : i32
    scf.if %11 {
      %c0_10 = arith.constant 0 : index
      %c0_11 = arith.constant 0 : index
      %12 = vector.load %arg6[%c0_10, %c0_11] : memref<512x128xf32, #tpu.memory_space<vmem>>, vector<512x128xf32>
      %13 = arith.truncf %12 : vector<512x128xf32> to vector<512x128xbf16>
      %c0_12 = arith.constant 0 : index
      %c0_13 = arith.constant 0 : index
      %14 = vector.load %arg5[%c0_12, %c0_13] : memref<512x128xbf16, #tpu.memory_space<vmem>>, vector<512x128xbf16>
      tpu.vector_store %arg5[%c0_12, %c0_13], %13 {strides = array<i32>} : memref<512x128xbf16, #tpu.memory_space<vmem>>, vector<512x128xbf16>,
    } else {
    }
    return
  }
  func.func @transform_0(%arg0: i32, %arg1: i32, %arg2: i32) -> (i32, i32) {
    %c0_i32 = arith.constant 0 : i32
    return %arg0, %arg2 : i32, i32
  }
  func.func @transform_1(%arg0: i32, %arg1: i32, %arg2: i32) -> (i32, i32) {
    %c0_i32 = arith.constant 0 : i32
    return %arg2, %arg1 : i32, i32
  }
  func.func @transform_2(%arg0: i32, %arg1: i32, %arg2: i32) -> (i32, i32) {
    %c0_i32 = arith.constant 0 : i32
    return %arg0, %arg1 : i32, i32
  }
}

</mosaic_0001>

<llo_original>
// kernel: tpu_custom_call.1
$region0: #{tpu_custom_call.1}
  #allocation0 [shape = 'u32[]', space=smem, size = 0x4, offset = 0x4, fixed_abs, tag = 'smem constant byte address 0x4 - core index']
  #allocation1 [shape = 'u32[72,128]{1,0:T(1,128)}', space=vmem, size = 0x9000, scoped, tag = 'internal scratch']
  #allocation2 [shape = 'f32[512,128]{1,0:T(8,128)}', space=vmem, size = 0x40000, scoped, tag = 'scratch operand']
  %s0 = inlined_call_operand.hbm [shape: bf16[512,128], index: 0, kind: input, shape index: {}]
  %s1 = inlined_call_operand.hbm [shape: bf16[128,128], index: 1, kind: input, shape index: {}]
  %s2 = inlined_call_operand.hbm [shape: bf16[512,128], index: 2, kind: output, shape index: {}]
  %s3 = sld [smem:[#allocation0]]
  $region34: #{tpu_custom_call.1} parent=0
    _
  %s5 = ssub.s32 1, %s3
  %s6 = scalar_select 0, %s5, %s3
  $region1: #{tpu_custom_call.1} parent=0
    #allocation3 [shape = 'u8[131072]{0}', space=vmem, size = 0x20000, scoped, tag = 'input window, operand 0, single buffered']
    #allocation4 [shape = 's32[1]{0}', space=sflag, size = 0x4, scoped, tag = 'scoped memory for tpu_custom_call.1']
    #allocation5 [shape = 's32[1]{0}', space=sflag, size = 0x4, scoped, tag = 'scoped memory for tpu_custom_call.1']
    #allocation6 [shape = 'u8[32768]{0}', space=vmem, size = 0x8000, scoped, tag = 'input window, operand 1, single buffered']
    #allocation7 [shape = 's32[1]{0}', space=sflag, size = 0x4, scoped, tag = 'scoped memory for tpu_custom_call.1']
    #allocation8 [shape = 'u8[131072]{0}', space=vmem, size = 0x20000, scoped, tag = 'output window, operand 0, single buffered']
    %7 = vsyncpa [#allocation4], 0
    %8 = vsyncpa [#allocation7], 0
    %9 = vsyncpa [#allocation5], 0
    // Predicated region
    $region2: #{tpu_custom_call.1} parent=1 // pred_check
      _
    $region3: #{tpu_custom_call.1} parent=1 // pred_check_branch
      %11 = sbr.rel (0) target = $region5
    $region4: #{tpu_custom_call.1} parent=1 // pred_region
      %13 = vsyncadd [#allocation4], 0
      %s14 = sshll.u32 %s0, 4
      %s15 = int_to_ptr.hbm [resolvable:$true] %s14
      %s16 = sshll.u32 [#allocation3], 4
      %s17 = int_to_ptr.vmem [resolvable:$true] %s16
      %22 = dma.hbm_to_vmem [thread:$0]  %s15, 4096, %s17, [#allocation4], 64, 64, 4
    $region5: #{tpu_custom_call.1} parent=1 // pred_fallthru
      _
    // Predicated region
    $region6: #{tpu_custom_call.1} parent=1 // pred_check
      _
    $region7: #{tpu_custom_call.1} parent=1 // pred_check_branch
      %24 = sbr.rel (0) target = $region9
    $region8: #{tpu_custom_call.1} parent=1 // pred_region
      %26 = vsyncadd [#allocation7], 0
      %s27 = sshll.u32 %s1, 4
      %s28 = int_to_ptr.hbm [resolvable:$true] %s27
      %s29 = sshll.u32 [#allocation6], 4
      %s30 = int_to_ptr.vmem [resolvable:$true] %s29
      %35 = dma.hbm_to_vmem [thread:$0]  %s28, 1024, %s30, [#allocation7], 64, 64, 4
    $region9: #{tpu_custom_call.1} parent=1 // pred_fallthru
      _
    // Predicated region
    $region10: #{tpu_custom_call.1} parent=1 // pred_check
      _
    $region11: #{tpu_custom_call.1} parent=1 // pred_check_branch
      %37 = sbr.rel (0) target = $region13
    $region12: #{tpu_custom_call.1} parent=1 // pred_region
      %39 = dma.done [#allocation4], 4096
    $region13: #{tpu_custom_call.1} parent=1 // pred_fallthru
      _
    // Predicated region
    $region14: #{tpu_custom_call.1} parent=1 // pred_check
      _
    $region15: #{tpu_custom_call.1} parent=1 // pred_check_branch
      %41 = sbr.rel (0) target = $region17
    $region16: #{tpu_custom_call.1} parent=1 // pred_region
      %43 = dma.done [#allocation7], 1024
    $region17: #{tpu_custom_call.1} parent=1 // pred_fallthru
      _
    %p44 = scmp.eq.s32.totalorder 0, 0
    // Predicated region
    $region18: #{tpu_custom_call.1} parent=1 // pred_check
      %p45 = pneg %p44
    $region19: #{tpu_custom_call.1} parent=1 // pred_check_branch
      %47 = sbr.rel (%p45) target = $region21
    $region20: #{tpu_custom_call.1} parent=1 // pred_region
      %48 = vst [vmem:[#allocation2] sm:$0xff] 0.0
      %49 = vst [vmem:[#allocation2 + $0x8] sm:$0xff] 0.0
      %50 = vst [vmem:[#allocation2 + $0x10] sm:$0xff] 0.0
      %51 = vst [vmem:[#allocation2 + $0x18] sm:$0xff] 0.0
      %52 = vst [vmem:[#allocation2 + $0x20] sm:$0xff] 0.0
      %53 = vst [vmem:[#allocation2 + $0x28] sm:$0xff] 0.0
      %54 = vst [vmem:[#allocation2 + $0x30] sm:$0xff] 0.0
      %55 = vst [vmem:[#allocation2 + $0x38] sm:$0xff] 0.0
      %56 = vst [vmem:[#allocation2 + $0x40] sm:$0xff] 0.0
      %57 = vst [vmem:[#allocation2 + $0x48] sm:$0xff] 0.0
      %58 = vst [vmem:[#allocation2 + $0x50] sm:$0xff] 0.0
      %59 = vst [vmem:[#allocation2 + $0x58] sm:$0xff] 0.0
      %60 = vst [vmem:[#allocation2 + $0x60] sm:$0xff] 0.0
      %61 = vst [vmem:[#allocation2 + $0x68] sm:$0xff] 0.0
      %62 = vst [vmem:[#allocation2 + $0x70] sm:$0xff] 0.0
      %63 = vst [vmem:[#allocation2 + $0x78] sm:$0xff] 0.0
      %64 = vst [vmem:[#allocation2 + $0x80] sm:$0xff] 0.0
      %65 = vst [vmem:[#allocation2 + $0x88] sm:$0xff] 0.0
      %66 = vst [vmem:[#allocation2 + $0x90] sm:$0xff] 0.0
      %67 = vst [vmem:[#allocation2 + $0x98] sm:$0xff] 0.0
      %68 = vst [vmem:[#allocation2 + $0xa0] sm:$0xff] 0.0
      %69 = vst [vmem:[#allocation2 + $0xa8] sm:$0xff] 0.0
      %70 = vst [vmem:[#allocation2 + $0xb0] sm:$0xff] 0.0
      %71 = vst [vmem:[#allocation2 + $0xb8] sm:$0xff] 0.0
      %72 = vst [vmem:[#allocation2 + $0xc0] sm:$0xff] 0.0
      %73 = vst [vmem:[#allocation2 + $0xc8] sm:$0xff] 0.0
      %74 = vst [vmem:[#allocation2 + $0xd0] sm:$0xff] 0.0
      %75 = vst [vmem:[#allocation2 + $0xd8] sm:$0xff] 0.0
      %76 = vst [vmem:[#allocation2 + $0xe0] sm:$0xff] 0.0
      %77 = vst [vmem:[#allocation2 + $0xe8] sm:$0xff] 0.0
      %78 = vst [vmem:[#allocation2 + $0xf0] sm:$0xff] 0.0
      %79 = vst [vmem:[#allocation2 + $0xf8] sm:$0xff] 0.0
      %80 = vst [vmem:[#allocation2 + $0x100] sm:$0xff] 0.0
      %81 = vst [vmem:[#allocation2 + $0x108] sm:$0xff] 0.0
      %82 = vst [vmem:[#allocation2 + $0x110] sm:$0xff] 0.0
      %83 = vst [vmem:[#allocation2 + $0x118] sm:$0xff] 0.0
      %84 = vst [vmem:[#allocation2 + $0x120] sm:$0xff] 0.0
      %85 = vst [vmem:[#allocation2 + $0x128] sm:$0xff] 0.0
      %86 = vst [vmem:[#allocation2 + $0x130] sm:$0xff] 0.0
      %87 = vst [vmem:[#allocation2 + $0x138] sm:$0xff] 0.0
      %88 = vst [vmem:[#allocation2 + $0x140] sm:$0xff] 0.0
      %89 = vst [vmem:[#allocation2 + $0x148] sm:$0xff] 0.0
      %90 = vst [vmem:[#allocation2 + $0x150] sm:$0xff] 0.0
      %91 = vst [vmem:[#allocation2 + $0x158] sm:$0xff] 0.0
      %92 = vst [vmem:[#allocation2 + $0x160] sm:$0xff] 0.0
      %93 = vst [vmem:[#allocation2 + $0x168] sm:$0xff] 0.0
      %94 = vst [vmem:[#allocation2 + $0x170] sm:$0xff] 0.0
      %95 = vst [vmem:[#allocation2 + $0x178] sm:$0xff] 0.0
      %96 = vst [vmem:[#allocation2 + $0x180] sm:$0xff] 0.0
      %97 = vst [vmem:[#allocation2 + $0x188] sm:$0xff] 0.0
      %98 = vst [vmem:[#allocation2 + $0x190] sm:$0xff] 0.0
      %99 = vst [vmem:[#allocation2 + $0x198] sm:$0xff] 0.0
      %100 = vst [vmem:[#allocation2 + $0x1a0] sm:$0xff] 0.0
      %101 = vst [vmem:[#allocation2 + $0x1a8] sm:$0xff] 0.0
      %102 = vst [vmem:[#allocation2 + $0x1b0] sm:$0xff] 0.0
      %103 = vst [vmem:[#allocation2 + $0x1b8] sm:$0xff] 0.0
      %104 = vst [vmem:[#allocation2 + $0x1c0] sm:$0xff] 0.0
      %105 = vst [vmem:[#allocation2 + $0x1c8] sm:$0xff] 0.0
      %106 = vst [vmem:[#allocation2 + $0x1d0] sm:$0xff] 0.0
      %107 = vst [vmem:[#allocation2 + $0x1d8] sm:$0xff] 0.0
      %108 = vst [vmem:[#allocation2 + $0x1e0] sm:$0xff] 0.0
      %109 = vst [vmem:[#allocation2 + $0x1e8] sm:$0xff] 0.0
      %110 = vst [vmem:[#allocation2 + $0x1f0] sm:$0xff] 0.0
      %111 = vst [vmem:[#allocation2 + $0x1f8] sm:$0xff] 0.0
    $region21: #{tpu_custom_call.1} parent=1 // pred_fallthru
      _
    %v112 = vld [vmem:[#allocation2] sm:$0xff]
    %v113 = vld [vmem:[#allocation2 + $0x8] sm:$0xff]
    %v114 = vld [vmem:[#allocation2 + $0x10] sm:$0xff]
    %v115 = vld [vmem:[#allocation2 + $0x18] sm:$0xff]
    %v116 = vld [vmem:[#allocation2 + $0x20] sm:$0xff]
    %v117 = vld [vmem:[#allocation2 + $0x28] sm:$0xff]
    %v118 = vld [vmem:[#allocation2 + $0x30] sm:$0xff]
    %v119 = vld [vmem:[#allocation2 + $0x38] sm:$0xff]
    %v120 = vld [vmem:[#allocation2 + $0x40] sm:$0xff]
    %v121 = vld [vmem:[#allocation2 + $0x48] sm:$0xff]
    %v122 = vld [vmem:[#allocation2 + $0x50] sm:$0xff]
    %v123 = vld [vmem:[#allocation2 + $0x58] sm:$0xff]
    %v124 = vld [vmem:[#allocation2 + $0x60] sm:$0xff]
    %v125 = vld [vmem:[#allocation2 + $0x68] sm:$0xff]
    %v126 = vld [vmem:[#allocation2 + $0x70] sm:$0xff]
    %v127 = vld [vmem:[#allocation2 + $0x78] sm:$0xff]
    %v128 = vld [vmem:[#allocation2 + $0x80] sm:$0xff]
    %v129 = vld [vmem:[#allocation2 + $0x88] sm:$0xff]
    %v130 = vld [vmem:[#allocation2 + $0x90] sm:$0xff]
    %v131 = vld [vmem:[#allocation2 + $0x98] sm:$0xff]
    %v132 = vld [vmem:[#allocation2 + $0xa0] sm:$0xff]
    %v133 = vld [vmem:[#allocation2 + $0xa8] sm:$0xff]
    %v134 = vld [vmem:[#allocation2 + $0xb0] sm:$0xff]
    %v135 = vld [vmem:[#allocation2 + $0xb8] sm:$0xff]
    %v136 = vld [vmem:[#allocation2 + $0xc0] sm:$0xff]
    %v137 = vld [vmem:[#allocation2 + $0xc8] sm:$0xff]
    %v138 = vld [vmem:[#allocation2 + $0xd0] sm:$0xff]
    %v139 = vld [vmem:[#allocation2 + $0xd8] sm:$0xff]
    %v140 = vld [vmem:[#allocation2 + $0xe0] sm:$0xff]
    %v141 = vld [vmem:[#allocation2 + $0xe8] sm:$0xff]
    %v142 = vld [vmem:[#allocation2 + $0xf0] sm:$0xff]
    %v143 = vld [vmem:[#allocation2 + $0xf8] sm:$0xff]
    %v144 = vld [vmem:[#allocation2 + $0x100] sm:$0xff]
    %v145 = vld [vmem:[#allocation2 + $0x108] sm:$0xff]
    %v146 = vld [vmem:[#allocation2 + $0x110] sm:$0xff]
    %v147 = vld [vmem:[#allocation2 + $0x118] sm:$0xff]
    %v148 = vld [vmem:[#allocation2 + $0x120] sm:$0xff]
    %v149 = vld [vmem:[#allocation2 + $0x128] sm:$0xff]
    %v150 = vld [vmem:[#allocation2 + $0x130] sm:$0xff]
    %v151 = vld [vmem:[#allocation2 + $0x138] sm:$0xff]
    %v152 = vld [vmem:[#allocation2 + $0x140] sm:$0xff]
    %v153 = vld [vmem:[#allocation2 + $0x148] sm:$0xff]
    %v154 = vld [vmem:[#allocation2 + $0x150] sm:$0xff]
    %v155 = vld [vmem:[#allocation2 + $0x158] sm:$0xff]
    %v156 = vld [vmem:[#allocation2 + $0x160] sm:$0xff]
    %v157 = vld [vmem:[#allocation2 + $0x168] sm:$0xff]
    %v158 = vld [vmem:[#allocation2 + $0x170] sm:$0xff]
    %v159 = vld [vmem:[#allocation2 + $0x178] sm:$0xff]
    %v160 = vld [vmem:[#allocation2 + $0x180] sm:$0xff]
    %v161 = vld [vmem:[#allocation2 + $0x188] sm:$0xff]
    %v162 = vld [vmem:[#allocation2 + $0x190] sm:$0xff]
    %v163 = vld [vmem:[#allocation2 + $0x198] sm:$0xff]
    %v164 = vld [vmem:[#allocation2 + $0x1a0] sm:$0xff]
    %v165 = vld [vmem:[#allocation2 + $0x1a8] sm:$0xff]
    %v166 = vld [vmem:[#allocation2 + $0x1b0] sm:$0xff]
    %v167 = vld [vmem:[#allocation2 + $0x1b8] sm:$0xff]
    %v168 = vld [vmem:[#allocation2 + $0x1c0] sm:$0xff]
    %v169 = vld [vmem:[#allocation2 + $0x1c8] sm:$0xff]
    %v170 = vld [vmem:[#allocation2 + $0x1d0] sm:$0xff]
    %v171 = vld [vmem:[#allocation2 + $0x1d8] sm:$0xff]
    %v172 = vld [vmem:[#allocation2 + $0x1e0] sm:$0xff]
    %v173 = vld [vmem:[#allocation2 + $0x1e8] sm:$0xff]
    %v174 = vld [vmem:[#allocation2 + $0x1f0] sm:$0xff]
    %v175 = vld [vmem:[#allocation2 + $0x1f8] sm:$0xff]
    %v176 = vld [vmem:[#allocation3] sm:$0xf]
    %v177 = vld [vmem:[#allocation3 + $0x4] sm:$0xf]
    %v178 = vld [vmem:[#allocation3 + $0x8] sm:$0xf]
    %v179 = vld [vmem:[#allocation3 + $0xc] sm:$0xf]
    %v180 = vld [vmem:[#allocation3 + $0x10] sm:$0xf]
    %v181 = vld [vmem:[#allocation3 + $0x14] sm:$0xf]
    %v182 = vld [vmem:[#allocation3 + $0x18] sm:$0xf]
    %v183 = vld [vmem:[#allocation3 + $0x1c] sm:$0xf]
    %v184 = vld [vmem:[#allocation3 + $0x20] sm:$0xf]
    %v185 = vld [vmem:[#allocation3 + $0x24] sm:$0xf]
    %v186 = vld [vmem:[#allocation3 + $0x28] sm:$0xf]
    %v187 = vld [vmem:[#allocation3 + $0x2c] sm:$0xf]
    %v188 = vld [vmem:[#allocation3 + $0x30] sm:$0xf]
    %v189 = vld [vmem:[#allocation3 + $0x34] sm:$0xf]
    %v190 = vld [vmem:[#allocation3 + $0x38] sm:$0xf]
    %v191 = vld [vmem:[#allocation3 + $0x3c] sm:$0xf]
    %v192 = vld [vmem:[#allocation3 + $0x40] sm:$0xf]
    %v193 = vld [vmem:[#allocation3 + $0x44] sm:$0xf]
    %v194 = vld [vmem:[#allocation3 + $0x48] sm:$0xf]
    %v195 = vld [vmem:[#allocation3 + $0x4c] sm:$0xf]
    %v196 = vld [vmem:[#allocation3 + $0x50] sm:$0xf]
    %v197 = vld [vmem:[#allocation3 + $0x54] sm:$0xf]
    %v198 = vld [vmem:[#allocation3 + $0x58] sm:$0xf]
    %v199 = vld [vmem:[#allocation3 + $0x5c] sm:$0xf]
    %v200 = vld [vmem:[#allocation3 + $0x60] sm:$0xf]
    %v201 = vld [vmem:[#allocation3 + $0x64] sm:$0xf]
    %v202 = vld [vmem:[#allocation3 + $0x68] sm:$0xf]
    %v203 = vld [vmem:[#allocation3 + $0x6c] sm:$0xf]
    %v204 = vld [vmem:[#allocation3 + $0x70] sm:$0xf]
    %v205 = vld [vmem:[#allocation3 + $0x74] sm:$0xf]
    %v206 = vld [vmem:[#allocation3 + $0x78] sm:$0xf]
    %v207 = vld [vmem:[#allocation3 + $0x7c] sm:$0xf]
    %v208 = vld [vmem:[#allocation3 + $0x80] sm:$0xf]
    %v209 = vld [vmem:[#allocation3 + $0x84] sm:$0xf]
    %v210 = vld [vmem:[#allocation3 + $0x88] sm:$0xf]
    %v211 = vld [vmem:[#allocation3 + $0x8c] sm:$0xf]
    %v212 = vld [vmem:[#allocation3 + $0x90] sm:$0xf]
    %v213 = vld [vmem:[#allocation3 + $0x94] sm:$0xf]
    %v214 = vld [vmem:[#allocation3 + $0x98] sm:$0xf]
    %v215 = vld [vmem:[#allocation3 + $0x9c] sm:$0xf]
    %v216 = vld [vmem:[#allocation3 + $0xa0] sm:$0xf]
    %v217 = vld [vmem:[#allocation3 + $0xa4] sm:$0xf]
    %v218 = vld [vmem:[#allocation3 + $0xa8] sm:$0xf]
    %v219 = vld [vmem:[#allocation3 + $0xac] sm:$0xf]
    %v220 = vld [vmem:[#allocation3 + $0xb0] sm:$0xf]
    %v221 = vld [vmem:[#allocation3 + $0xb4] sm:$0xf]
    %v222 = vld [vmem:[#allocation3 + $0xb8] sm:$0xf]
    %v223 = vld [vmem:[#allocation3 + $0xbc] sm:$0xf]
    %v224 = vld [vmem:[#allocation3 + $0xc0] sm:$0xf]
    %v225 = vld [vmem:[#allocation3 + $0xc4] sm:$0xf]
    %v226 = vld [vmem:[#allocation3 + $0xc8] sm:$0xf]
    %v227 = vld [vmem:[#allocation3 + $0xcc] sm:$0xf]
    %v228 = vld [vmem:[#allocation3 + $0xd0] sm:$0xf]
    %v229 = vld [vmem:[#allocation3 + $0xd4] sm:$0xf]
    %v230 = vld [vmem:[#allocation3 + $0xd8] sm:$0xf]
    %v231 = vld [vmem:[#allocation3 + $0xdc] sm:$0xf]
    %v232 = vld [vmem:[#allocation3 + $0xe0] sm:$0xf]
    %v233 = vld [vmem:[#allocation3 + $0xe4] sm:$0xf]
    %v234 = vld [vmem:[#allocation3 + $0xe8] sm:$0xf]
    %v235 = vld [vmem:[#allocation3 + $0xec] sm:$0xf]
    %v236 = vld [vmem:[#allocation3 + $0xf0] sm:$0xf]
    %v237 = vld [vmem:[#allocation3 + $0xf4] sm:$0xf]
    %v238 = vld [vmem:[#allocation3 + $0xf8] sm:$0xf]
    %v239 = vld [vmem:[#allocation3 + $0xfc] sm:$0xf]
    %v240 = vld [vmem:[#allocation6] sm:$0xf]
    %v241 = vld [vmem:[#allocation6 + $0x4] sm:$0xf]
    %v242 = vld [vmem:[#allocation6 + $0x8] sm:$0xf]
    %v243 = vld [vmem:[#allocation6 + $0xc] sm:$0xf]
    %v244 = vld [vmem:[#allocation6 + $0x10] sm:$0xf]
    %v245 = vld [vmem:[#allocation6 + $0x14] sm:$0xf]
    %v246 = vld [vmem:[#allocation6 + $0x18] sm:$0xf]
    %v247 = vld [vmem:[#allocation6 + $0x1c] sm:$0xf]
    %v248 = vld [vmem:[#allocation6 + $0x20] sm:$0xf]
    %v249 = vld [vmem:[#allocation6 + $0x24] sm:$0xf]
    %v250 = vld [vmem:[#allocation6 + $0x28] sm:$0xf]
    %v251 = vld [vmem:[#allocation6 + $0x2c] sm:$0xf]
    %v252 = vld [vmem:[#allocation6 + $0x30] sm:$0xf]
    %v253 = vld [vmem:[#allocation6 + $0x34] sm:$0xf]
    %v254 = vld [vmem:[#allocation6 + $0x38] sm:$0xf]
    %v255 = vld [vmem:[#allocation6 + $0x3c] sm:$0xf]
    %v320 = vunpack.c.l.b16 %v176
    %v321 = vunpack.c.l.b16 %v177
    %v322 = vunpack.c.l.b16 %v178
    %v323 = vunpack.c.l.b16 %v179
    %v324 = vunpack.c.l.b16 %v180
    %v325 = vunpack.c.l.b16 %v181
    %v326 = vunpack.c.l.b16 %v182
    %v327 = vunpack.c.l.b16 %v183
    %v328 = vunpack.c.l.b16 %v184
    %v329 = vunpack.c.l.b16 %v185
    %v330 = vunpack.c.l.b16 %v186
    %v331 = vunpack.c.l.b16 %v187
    %v332 = vunpack.c.l.b16 %v188
    %v333 = vunpack.c.l.b16 %v189
    %v334 = vunpack.c.l.b16 %v190
    %v335 = vunpack.c.l.b16 %v191
    %v336 = vunpack.c.l.b16 %v192
    %v337 = vunpack.c.l.b16 %v193
    %v338 = vunpack.c.l.b16 %v194
    %v339 = vunpack.c.l.b16 %v195
    %v340 = vunpack.c.l.b16 %v196
    %v341 = vunpack.c.l.b16 %v197
    %v342 = vunpack.c.l.b16 %v198
    %v343 = vunpack.c.l.b16 %v199
    %v344 = vunpack.c.l.b16 %v200
    %v345 = vunpack.c.l.b16 %v201
    %v346 = vunpack.c.l.b16 %v202
    %v347 = vunpack.c.l.b16 %v203
    %v348 = vunpack.c.l.b16 %v204
    %v349 = vunpack.c.l.b16 %v205
    %v350 = vunpack.c.l.b16 %v206
    %v351 = vunpack.c.l.b16 %v207
    %v352 = vunpack.c.l.b16 %v208
    %v353 = vunpack.c.l.b16 %v209
    %v354 = vunpack.c.l.b16 %v210
    %v355 = vunpack.c.l.b16 %v211
    %v356 = vunpack.c.l.b16 %v212
    %v357 = vunpack.c.l.b16 %v213
    %v358 = vunpack.c.l.b16 %v214
    %v359 = vunpack.c.l.b16 %v215
    %v360 = vunpack.c.l.b16 %v216
    %v361 = vunpack.c.l.b16 %v217
    %v362 = vunpack.c.l.b16 %v218
    %v363 = vunpack.c.l.b16 %v219
    %v364 = vunpack.c.l.b16 %v220
    %v365 = vunpack.c.l.b16 %v221
    %v366 = vunpack.c.l.b16 %v222
    %v367 = vunpack.c.l.b16 %v223
    %v368 = vunpack.c.l.b16 %v224
    %v369 = vunpack.c.l.b16 %v225
    %v370 = vunpack.c.l.b16 %v226
    %v371 = vunpack.c.l.b16 %v227
    %v372 = vunpack.c.l.b16 %v228
    %v373 = vunpack.c.l.b16 %v229
    %v374 = vunpack.c.l.b16 %v230
    %v375 = vunpack.c.l.b16 %v231
    %v376 = vunpack.c.l.b16 %v232
    %v377 = vunpack.c.l.b16 %v233
    %v378 = vunpack.c.l.b16 %v234
    %v379 = vunpack.c.l.b16 %v235
    %v380 = vunpack.c.l.b16 %v236
    %v381 = vunpack.c.l.b16 %v237
    %v382 = vunpack.c.l.b16 %v238
    %v383 = vunpack.c.l.b16 %v239
    %v384 = vpack.c.b16 %v321, %v320
    %v385 = vpack.c.b16 %v323, %v322
    %v386 = vpack.c.b16 %v325, %v324
    %v387 = vpack.c.b16 %v327, %v326
    %v388 = vpack.c.b16 %v329, %v328
    %v389 = vpack.c.b16 %v331, %v330
    %v390 = vpack.c.b16 %v333, %v332
    %v391 = vpack.c.b16 %v335, %v334
    %v392 = vpack.c.b16 %v337, %v336
    %v393 = vpack.c.b16 %v339, %v338
    %v394 = vpack.c.b16 %v341, %v340
    %v395 = vpack.c.b16 %v343, %v342
    %v396 = vpack.c.b16 %v345, %v344
    %v397 = vpack.c.b16 %v347, %v346
    %v398 = vpack.c.b16 %v349, %v348
    %v399 = vpack.c.b16 %v351, %v350
    %v400 = vpack.c.b16 %v353, %v352
    %v401 = vpack.c.b16 %v355, %v354
    %v402 = vpack.c.b16 %v357, %v356
    %v403 = vpack.c.b16 %v359, %v358
    %v404 = vpack.c.b16 %v361, %v360
    %v405 = vpack.c.b16 %v363, %v362
    %v406 = vpack.c.b16 %v365, %v364
    %v407 = vpack.c.b16 %v367, %v366
    %v408 = vpack.c.b16 %v369, %v368
    %v409 = vpack.c.b16 %v371, %v370
    %v410 = vpack.c.b16 %v373, %v372
    %v411 = vpack.c.b16 %v375, %v374
    %v412 = vpack.c.b16 %v377, %v376
    %v413 = vpack.c.b16 %v379, %v378
    %v414 = vpack.c.b16 %v381, %v380
    %v415 = vpack.c.b16 %v383, %v382
    %v464 = vunpack.c.l.b16 %v240
    %v465 = vunpack.c.l.b16 %v241
    %v466 = vunpack.c.l.b16 %v242
    %v467 = vunpack.c.l.b16 %v243
    %v468 = vunpack.c.l.b16 %v244
    %v469 = vunpack.c.l.b16 %v245
    %v470 = vunpack.c.l.b16 %v246
    %v471 = vunpack.c.l.b16 %v247
    %v472 = vunpack.c.l.b16 %v248
    %v473 = vunpack.c.l.b16 %v249
    %v474 = vunpack.c.l.b16 %v250
    %v475 = vunpack.c.l.b16 %v251
    %v476 = vunpack.c.l.b16 %v252
    %v477 = vunpack.c.l.b16 %v253
    %v478 = vunpack.c.l.b16 %v254
    %v479 = vunpack.c.l.b16 %v255
    %v480 = vpack.c.b16 %v465, %v464
    %v481 = vpack.c.b16 %v467, %v466
    %v482 = vpack.c.b16 %v469, %v468
    %v483 = vpack.c.b16 %v471, %v470
    %v484 = vpack.c.b16 %v473, %v472
    %v485 = vpack.c.b16 %v475, %v474
    %v486 = vpack.c.b16 %v477, %v476
    %v487 = vpack.c.b16 %v479, %v478
    %496 = vmatpush.bf16.msra.mxu0 %v487
    %497 = vmatpush.bf16.msra.mxu0 %v486
    %498 = vmatpush.bf16.msra.mxu0 %v485
    %499 = vmatpush.bf16.msra.mxu0 %v484
    %500 = vmatpush.bf16.msra.mxu0 %v483
    %501 = vmatpush.bf16.msra.mxu0 %v482
    %502 = vmatpush.bf16.msra.mxu0 %v481
    %503 = vmatpush.bf16.msra.mxu0 %v480
    %504 = vmatmul.bf16.gmra.mxu0 %v384
    %v505 = vpop.f32.mrf.mxu0
    %v506 = vadd.f32 0.0, %v505
    %v507 = vpop.f32.mrf.mxu0
    %v508 = vadd.f32 0.0, %v507
    %509 = vmatmul.bf16.gmra.mxu0 %v385
    %v510 = vpop.f32.mrf.mxu0
    %v511 = vadd.f32 0.0, %v510
    %v512 = vpop.f32.mrf.mxu0
    %v513 = vadd.f32 0.0, %v512
    %514 = vmatmul.bf16.gmra.mxu0 %v386
    %v515 = vpop.f32.mrf.mxu0
    %v516 = vadd.f32 0.0, %v515
    %v517 = vpop.f32.mrf.mxu0
    %v518 = vadd.f32 0.0, %v517
    %519 = vmatmul.bf16.gmra.mxu0 %v387
    %v520 = vpop.f32.mrf.mxu0
    %v521 = vadd.f32 0.0, %v520
    %v522 = vpop.f32.mrf.mxu0
    %v523 = vadd.f32 0.0, %v522
    %524 = vmatmul.bf16.gmra.mxu0 %v388
    %v525 = vpop.f32.mrf.mxu0
    %v526 = vadd.f32 0.0, %v525
    %v527 = vpop.f32.mrf.mxu0
    %v528 = vadd.f32 0.0, %v527
    %529 = vmatmul.bf16.gmra.mxu0 %v389
    %v530 = vpop.f32.mrf.mxu0
    %v531 = vadd.f32 0.0, %v530
    %v532 = vpop.f32.mrf.mxu0
    %v533 = vadd.f32 0.0, %v532
    %534 = vmatmul.bf16.gmra.mxu0 %v390
    %v535 = vpop.f32.mrf.mxu0
    %v536 = vadd.f32 0.0, %v535
    %v537 = vpop.f32.mrf.mxu0
    %v538 = vadd.f32 0.0, %v537
    %539 = vmatmul.bf16.gmra.mxu0 %v391
    %v540 = vpop.f32.mrf.mxu0
    %v541 = vadd.f32 0.0, %v540
    %v542 = vpop.f32.mrf.mxu0
    %v543 = vadd.f32 0.0, %v542
    %544 = vmatmul.bf16.gmra.mxu0 %v392
    %v545 = vpop.f32.mrf.mxu0
    %v546 = vadd.f32 0.0, %v545
    %v547 = vpop.f32.mrf.mxu0
    %v548 = vadd.f32 0.0, %v547
    %549 = vmatmul.bf16.gmra.mxu0 %v393
    %v550 = vpop.f32.mrf.mxu0
    %v551 = vadd.f32 0.0, %v550
    %v552 = vpop.f32.mrf.mxu0
    %v553 = vadd.f32 0.0, %v552
    %554 = vmatmul.bf16.gmra.mxu0 %v394
    %v555 = vpop.f32.mrf.mxu0
    %v556 = vadd.f32 0.0, %v555
    %v557 = vpop.f32.mrf.mxu0
    %v558 = vadd.f32 0.0, %v557
    %559 = vmatmul.bf16.gmra.mxu0 %v395
    %v560 = vpop.f32.mrf.mxu0
    %v561 = vadd.f32 0.0, %v560
    %v562 = vpop.f32.mrf.mxu0
    %v563 = vadd.f32 0.0, %v562
    %564 = vmatmul.bf16.gmra.mxu0 %v396
    %v565 = vpop.f32.mrf.mxu0
    %v566 = vadd.f32 0.0, %v565
    %v567 = vpop.f32.mrf.mxu0
    %v568 = vadd.f32 0.0, %v567
    %569 = vmatmul.bf16.gmra.mxu0 %v397
    %v570 = vpop.f32.mrf.mxu0
    %v571 = vadd.f32 0.0, %v570
    %v572 = vpop.f32.mrf.mxu0
    %v573 = vadd.f32 0.0, %v572
    %574 = vmatmul.bf16.gmra.mxu0 %v398
    %v575 = vpop.f32.mrf.mxu0
    %v576 = vadd.f32 0.0, %v575
    %v577 = vpop.f32.mrf.mxu0
    %v578 = vadd.f32 0.0, %v577
    %579 = vmatmul.bf16.gmra.mxu0 %v399
    %v580 = vpop.f32.mrf.mxu0
    %v581 = vadd.f32 0.0, %v580
    %v582 = vpop.f32.mrf.mxu0
    %v583 = vadd.f32 0.0, %v582
    %584 = vmatmul.bf16.gmra.mxu0 %v400
    %v585 = vpop.f32.mrf.mxu0
    %v586 = vadd.f32 0.0, %v585
    %v587 = vpop.f32.mrf.mxu0
    %v588 = vadd.f32 0.0, %v587
    %589 = vmatmul.bf16.gmra.mxu0 %v401
    %v590 = vpop.f32.mrf.mxu0
    %v591 = vadd.f32 0.0, %v590
    %v592 = vpop.f32.mrf.mxu0
    %v593 = vadd.f32 0.0, %v592
    %594 = vmatmul.bf16.gmra.mxu0 %v402
    %v595 = vpop.f32.mrf.mxu0
    %v596 = vadd.f32 0.0, %v595
    %v597 = vpop.f32.mrf.mxu0
    %v598 = vadd.f32 0.0, %v597
    %599 = vmatmul.bf16.gmra.mxu0 %v403
    %v600 = vpop.f32.mrf.mxu0
    %v601 = vadd.f32 0.0, %v600
    %v602 = vpop.f32.mrf.mxu0
    %v603 = vadd.f32 0.0, %v602
    %604 = vmatmul.bf16.gmra.mxu0 %v404
    %v605 = vpop.f32.mrf.mxu0
    %v606 = vadd.f32 0.0, %v605
    %v607 = vpop.f32.mrf.mxu0
    %v608 = vadd.f32 0.0, %v607
    %609 = vmatmul.bf16.gmra.mxu0 %v405
    %v610 = vpop.f32.mrf.mxu0
    %v611 = vadd.f32 0.0, %v610
    %v612 = vpop.f32.mrf.mxu0
    %v613 = vadd.f32 0.0, %v612
    %614 = vmatmul.bf16.gmra.mxu0 %v406
    %v615 = vpop.f32.mrf.mxu0
    %v616 = vadd.f32 0.0, %v615
    %v617 = vpop.f32.mrf.mxu0
    %v618 = vadd.f32 0.0, %v617
    %619 = vmatmul.bf16.gmra.mxu0 %v407
    %v620 = vpop.f32.mrf.mxu0
    %v621 = vadd.f32 0.0, %v620
    %v622 = vpop.f32.mrf.mxu0
    %v623 = vadd.f32 0.0, %v622
    %624 = vmatmul.bf16.gmra.mxu0 %v408
    %v625 = vpop.f32.mrf.mxu0
    %v626 = vadd.f32 0.0, %v625
    %v627 = vpop.f32.mrf.mxu0
    %v628 = vadd.f32 0.0, %v627
    %629 = vmatmul.bf16.gmra.mxu0 %v409
    %v630 = vpop.f32.mrf.mxu0
    %v631 = vadd.f32 0.0, %v630
    %v632 = vpop.f32.mrf.mxu0
    %v633 = vadd.f32 0.0, %v632
    %634 = vmatmul.bf16.gmra.mxu0 %v410
    %v635 = vpop.f32.mrf.mxu0
    %v636 = vadd.f32 0.0, %v635
    %v637 = vpop.f32.mrf.mxu0
    %v638 = vadd.f32 0.0, %v637
    %639 = vmatmul.bf16.gmra.mxu0 %v411
    %v640 = vpop.f32.mrf.mxu0
    %v641 = vadd.f32 0.0, %v640
    %v642 = vpop.f32.mrf.mxu0
    %v643 = vadd.f32 0.0, %v642
    %644 = vmatmul.bf16.gmra.mxu0 %v412
    %v645 = vpop.f32.mrf.mxu0
    %v646 = vadd.f32 0.0, %v645
    %v647 = vpop.f32.mrf.mxu0
    %v648 = vadd.f32 0.0, %v647
    %649 = vmatmul.bf16.gmra.mxu0 %v413
    %v650 = vpop.f32.mrf.mxu0
    %v651 = vadd.f32 0.0, %v650
    %v652 = vpop.f32.mrf.mxu0
    %v653 = vadd.f32 0.0, %v652
    %654 = vmatmul.bf16.gmra.mxu0 %v414
    %v655 = vpop.f32.mrf.mxu0
    %v656 = vadd.f32 0.0, %v655
    %v657 = vpop.f32.mrf.mxu0
    %v658 = vadd.f32 0.0, %v657
    %659 = vmatmul.bf16.gmra.mxu0 %v415
    %v660 = vpop.f32.mrf.mxu0
    %v661 = vadd.f32 0.0, %v660
    %v662 = vpop.f32.mrf.mxu0
    %v663 = vadd.f32 0.0, %v662
    %664 = vdwg.mxu0
    %v665 = vadd.f32 %v112, %v506
    %v666 = vadd.f32 %v113, %v508
    %v667 = vadd.f32 %v114, %v511
    %v668 = vadd.f32 %v115, %v513
    %v669 = vadd.f32 %v116, %v516
    %v670 = vadd.f32 %v117, %v518
    %v671 = vadd.f32 %v118, %v521
    %v672 = vadd.f32 %v119, %v523
    %v673 = vadd.f32 %v120, %v526
    %v674 = vadd.f32 %v121, %v528
    %v675 = vadd.f32 %v122, %v531
    %v676 = vadd.f32 %v123, %v533
    %v677 = vadd.f32 %v124, %v536
    %v678 = vadd.f32 %v125, %v538
    %v679 = vadd.f32 %v126, %v541
    %v680 = vadd.f32 %v127, %v543
    %v681 = vadd.f32 %v128, %v546
    %v682 = vadd.f32 %v129, %v548
    %v683 = vadd.f32 %v130, %v551
    %v684 = vadd.f32 %v131, %v553
    %v685 = vadd.f32 %v132, %v556
    %v686 = vadd.f32 %v133, %v558
    %v687 = vadd.f32 %v134, %v561
    %v688 = vadd.f32 %v135, %v563
    %v689 = vadd.f32 %v136, %v566
    %v690 = vadd.f32 %v137, %v568
    %v691 = vadd.f32 %v138, %v571
    %v692 = vadd.f32 %v139, %v573
    %v693 = vadd.f32 %v140, %v576
    %v694 = vadd.f32 %v141, %v578
    %v695 = vadd.f32 %v142, %v581
    %v696 = vadd.f32 %v143, %v583
    %v697 = vadd.f32 %v144, %v586
    %v698 = vadd.f32 %v145, %v588
    %v699 = vadd.f32 %v146, %v591
    %v700 = vadd.f32 %v147, %v593
    %v701 = vadd.f32 %v148, %v596
    %v702 = vadd.f32 %v149, %v598
    %v703 = vadd.f32 %v150, %v601
    %v704 = vadd.f32 %v151, %v603
    %v705 = vadd.f32 %v152, %v606
    %v706 = vadd.f32 %v153, %v608
    %v707 = vadd.f32 %v154, %v611
    %v708 = vadd.f32 %v155, %v613
    %v709 = vadd.f32 %v156, %v616
    %v710 = vadd.f32 %v157, %v618
    %v711 = vadd.f32 %v158, %v621
    %v712 = vadd.f32 %v159, %v623
    %v713 = vadd.f32 %v160, %v626
    %v714 = vadd.f32 %v161, %v628
    %v715 = vadd.f32 %v162, %v631
    %v716 = vadd.f32 %v163, %v633
    %v717 = vadd.f32 %v164, %v636
    %v718 = vadd.f32 %v165, %v638
    %v719 = vadd.f32 %v166, %v641
    %v720 = vadd.f32 %v167, %v643
    %v721 = vadd.f32 %v168, %v646
    %v722 = vadd.f32 %v169, %v648
    %v723 = vadd.f32 %v170, %v651
    %v724 = vadd.f32 %v171, %v653
    %v725 = vadd.f32 %v172, %v656
    %v726 = vadd.f32 %v173, %v658
    %v727 = vadd.f32 %v174, %v661
    %v728 = vadd.f32 %v175, %v663
    %729 = vst [vmem:[#allocation2] sm:$0xff] %v665
    %730 = vst [vmem:[#allocation2 + $0x8] sm:$0xff] %v666
    %731 = vst [vmem:[#allocation2 + $0x10] sm:$0xff] %v667
    %732 = vst [vmem:[#allocation2 + $0x18] sm:$0xff] %v668
    %733 = vst [vmem:[#allocation2 + $0x20] sm:$0xff] %v669
    %734 = vst [vmem:[#allocation2 + $0x28] sm:$0xff] %v670
    %735 = vst [vmem:[#allocation2 + $0x30] sm:$0xff] %v671
    %736 = vst [vmem:[#allocation2 + $0x38] sm:$0xff] %v672
    %737 = vst [vmem:[#allocation2 + $0x40] sm:$0xff] %v673
    %738 = vst [vmem:[#allocation2 + $0x48] sm:$0xff] %v674
    %739 = vst [vmem:[#allocation2 + $0x50] sm:$0xff] %v675
    %740 = vst [vmem:[#allocation2 + $0x58] sm:$0xff] %v676
    %741 = vst [vmem:[#allocation2 + $0x60] sm:$0xff] %v677
    %742 = vst [vmem:[#allocation2 + $0x68] sm:$0xff] %v678
    %743 = vst [vmem:[#allocation2 + $0x70] sm:$0xff] %v679
    %744 = vst [vmem:[#allocation2 + $0x78] sm:$0xff] %v680
    %745 = vst [vmem:[#allocation2 + $0x80] sm:$0xff] %v681
    %746 = vst [vmem:[#allocation2 + $0x88] sm:$0xff] %v682
    %747 = vst [vmem:[#allocation2 + $0x90] sm:$0xff] %v683
    %748 = vst [vmem:[#allocation2 + $0x98] sm:$0xff] %v684
    %749 = vst [vmem:[#allocation2 + $0xa0] sm:$0xff] %v685
    %750 = vst [vmem:[#allocation2 + $0xa8] sm:$0xff] %v686
    %751 = vst [vmem:[#allocation2 + $0xb0] sm:$0xff] %v687
    %752 = vst [vmem:[#allocation2 + $0xb8] sm:$0xff] %v688
    %753 = vst [vmem:[#allocation2 + $0xc0] sm:$0xff] %v689
    %754 = vst [vmem:[#allocation2 + $0xc8] sm:$0xff] %v690
    %755 = vst [vmem:[#allocation2 + $0xd0] sm:$0xff] %v691
    %756 = vst [vmem:[#allocation2 + $0xd8] sm:$0xff] %v692
    %757 = vst [vmem:[#allocation2 + $0xe0] sm:$0xff] %v693
    %758 = vst [vmem:[#allocation2 + $0xe8] sm:$0xff] %v694
    %759 = vst [vmem:[#allocation2 + $0xf0] sm:$0xff] %v695
    %760 = vst [vmem:[#allocation2 + $0xf8] sm:$0xff] %v696
    %761 = vst [vmem:[#allocation2 + $0x100] sm:$0xff] %v697
    %762 = vst [vmem:[#allocation2 + $0x108] sm:$0xff] %v698
    %763 = vst [vmem:[#allocation2 + $0x110] sm:$0xff] %v699
    %764 = vst [vmem:[#allocation2 + $0x118] sm:$0xff] %v700
    %765 = vst [vmem:[#allocation2 + $0x120] sm:$0xff] %v701
    %766 = vst [vmem:[#allocation2 + $0x128] sm:$0xff] %v702
    %767 = vst [vmem:[#allocation2 + $0x130] sm:$0xff] %v703
    %768 = vst [vmem:[#allocation2 + $0x138] sm:$0xff] %v704
    %769 = vst [vmem:[#allocation2 + $0x140] sm:$0xff] %v705
    %770 = vst [vmem:[#allocation2 + $0x148] sm:$0xff] %v706
    %771 = vst [vmem:[#allocation2 + $0x150] sm:$0xff] %v707
    %772 = vst [vmem:[#allocation2 + $0x158] sm:$0xff] %v708
    %773 = vst [vmem:[#allocation2 + $0x160] sm:$0xff] %v709
    %774 = vst [vmem:[#allocation2 + $0x168] sm:$0xff] %v710
    %775 = vst [vmem:[#allocation2 + $0x170] sm:$0xff] %v711
    %776 = vst [vmem:[#allocation2 + $0x178] sm:$0xff] %v712
    %777 = vst [vmem:[#allocation2 + $0x180] sm:$0xff] %v713
    %778 = vst [vmem:[#allocation2 + $0x188] sm:$0xff] %v714
    %779 = vst [vmem:[#allocation2 + $0x190] sm:$0xff] %v715
    %780 = vst [vmem:[#allocation2 + $0x198] sm:$0xff] %v716
    %781 = vst [vmem:[#allocation2 + $0x1a0] sm:$0xff] %v717
    %782 = vst [vmem:[#allocation2 + $0x1a8] sm:$0xff] %v718
    %783 = vst [vmem:[#allocation2 + $0x1b0] sm:$0xff] %v719
    %784 = vst [vmem:[#allocation2 + $0x1b8] sm:$0xff] %v720
    %785 = vst [vmem:[#allocation2 + $0x1c0] sm:$0xff] %v721
    %786 = vst [vmem:[#allocation2 + $0x1c8] sm:$0xff] %v722
    %787 = vst [vmem:[#allocation2 + $0x1d0] sm:$0xff] %v723
    %788 = vst [vmem:[#allocation2 + $0x1d8] sm:$0xff] %v724
    %789 = vst [vmem:[#allocation2 + $0x1e0] sm:$0xff] %v725
    %790 = vst [vmem:[#allocation2 + $0x1e8] sm:$0xff] %v726
    %791 = vst [vmem:[#allocation2 + $0x1f0] sm:$0xff] %v727
    %792 = vst [vmem:[#allocation2 + $0x1f8] sm:$0xff] %v728
    // Predicated region
    $region22: #{tpu_custom_call.1} parent=1 // pred_check
      %p793 = pneg %p44
    $region23: #{tpu_custom_call.1} parent=1 // pred_check_branch
      %795 = sbr.rel (%p793) target = $region25
    $region24: #{tpu_custom_call.1} parent=1 // pred_region
      %v796 = vld [vmem:[#allocation2] sm:$0xff]
      %v797 = vld [vmem:[#allocation2 + $0x8] sm:$0xff]
      %v798 = vld [vmem:[#allocation2 + $0x10] sm:$0xff]
      %v799 = vld [vmem:[#allocation2 + $0x18] sm:$0xff]
      %v800 = vld [vmem:[#allocation2 + $0x20] sm:$0xff]
      %v801 = vld [vmem:[#allocation2 + $0x28] sm:$0xff]
      %v802 = vld [vmem:[#allocation2 + $0x30] sm:$0xff]
      %v803 = vld [vmem:[#allocation2 + $0x38] sm:$0xff]
      %v804 = vld [vmem:[#allocation2 + $0x40] sm:$0xff]
      %v805 = vld [vmem:[#allocation2 + $0x48] sm:$0xff]
      %v806 = vld [vmem:[#allocation2 + $0x50] sm:$0xff]
      %v807 = vld [vmem:[#allocation2 + $0x58] sm:$0xff]
      %v808 = vld [vmem:[#allocation2 + $0x60] sm:$0xff]
      %v809 = vld [vmem:[#allocation2 + $0x68] sm:$0xff]
      %v810 = vld [vmem:[#allocation2 + $0x70] sm:$0xff]
      %v811 = vld [vmem:[#allocation2 + $0x78] sm:$0xff]
      %v812 = vld [vmem:[#allocation2 + $0x80] sm:$0xff]
      %v813 = vld [vmem:[#allocation2 + $0x88] sm:$0xff]
      %v814 = vld [vmem:[#allocation2 + $0x90] sm:$0xff]
      %v815 = vld [vmem:[#allocation2 + $0x98] sm:$0xff]
      %v816 = vld [vmem:[#allocation2 + $0xa0] sm:$0xff]
      %v817 = vld [vmem:[#allocation2 + $0xa8] sm:$0xff]
      %v818 = vld [vmem:[#allocation2 + $0xb0] sm:$0xff]
      %v819 = vld [vmem:[#allocation2 + $0xb8] sm:$0xff]
      %v820 = vld [vmem:[#allocation2 + $0xc0] sm:$0xff]
      %v821 = vld [vmem:[#allocation2 + $0xc8] sm:$0xff]
      %v822 = vld [vmem:[#allocation2 + $0xd0] sm:$0xff]
      %v823 = vld [vmem:[#allocation2 + $0xd8] sm:$0xff]
      %v824 = vld [vmem:[#allocation2 + $0xe0] sm:$0xff]
      %v825 = vld [vmem:[#allocation2 + $0xe8] sm:$0xff]
      %v826 = vld [vmem:[#allocation2 + $0xf0] sm:$0xff]
      %v827 = vld [vmem:[#allocation2 + $0xf8] sm:$0xff]
      %v828 = vld [vmem:[#allocation2 + $0x100] sm:$0xff]
      %v829 = vld [vmem:[#allocation2 + $0x108] sm:$0xff]
      %v830 = vld [vmem:[#allocation2 + $0x110] sm:$0xff]
      %v831 = vld [vmem:[#allocation2 + $0x118] sm:$0xff]
      %v832 = vld [vmem:[#allocation2 + $0x120] sm:$0xff]
      %v833 = vld [vmem:[#allocation2 + $0x128] sm:$0xff]
      %v834 = vld [vmem:[#allocation2 + $0x130] sm:$0xff]
      %v835 = vld [vmem:[#allocation2 + $0x138] sm:$0xff]
      %v836 = vld [vmem:[#allocation2 + $0x140] sm:$0xff]
      %v837 = vld [vmem:[#allocation2 + $0x148] sm:$0xff]
      %v838 = vld [vmem:[#allocation2 + $0x150] sm:$0xff]
      %v839 = vld [vmem:[#allocation2 + $0x158] sm:$0xff]
      %v840 = vld [vmem:[#allocation2 + $0x160] sm:$0xff]
      %v841 = vld [vmem:[#allocation2 + $0x168] sm:$0xff]
      %v842 = vld [vmem:[#allocation2 + $0x170] sm:$0xff]
      %v843 = vld [vmem:[#allocation2 + $0x178] sm:$0xff]
      %v844 = vld [vmem:[#allocation2 + $0x180] sm:$0xff]
      %v845 = vld [vmem:[#allocation2 + $0x188] sm:$0xff]
      %v846 = vld [vmem:[#allocation2 + $0x190] sm:$0xff]
      %v847 = vld [vmem:[#allocation2 + $0x198] sm:$0xff]
      %v848 = vld [vmem:[#allocation2 + $0x1a0] sm:$0xff]
      %v849 = vld [vmem:[#allocation2 + $0x1a8] sm:$0xff]
      %v850 = vld [vmem:[#allocation2 + $0x1b0] sm:$0xff]
      %v851 = vld [vmem:[#allocation2 + $0x1b8] sm:$0xff]
      %v852 = vld [vmem:[#allocation2 + $0x1c0] sm:$0xff]
      %v853 = vld [vmem:[#allocation2 + $0x1c8] sm:$0xff]
      %v854 = vld [vmem:[#allocation2 + $0x1d0] sm:$0xff]
      %v855 = vld [vmem:[#allocation2 + $0x1d8] sm:$0xff]
      %v856 = vld [vmem:[#allocation2 + $0x1e0] sm:$0xff]
      %v857 = vld [vmem:[#allocation2 + $0x1e8] sm:$0xff]
      %v858 = vld [vmem:[#allocation2 + $0x1f0] sm:$0xff]
      %v859 = vld [vmem:[#allocation2 + $0x1f8] sm:$0xff]
      %v860 = vpack.c.bf16 %v796, %v796
      %v861 = vpack.c.bf16 %v797, %v797
      %v862 = vpack.c.bf16 %v798, %v798
      %v863 = vpack.c.bf16 %v799, %v799
      %v864 = vpack.c.bf16 %v800, %v800
      %v865 = vpack.c.bf16 %v801, %v801
      %v866 = vpack.c.bf16 %v802, %v802
      %v867 = vpack.c.bf16 %v803, %v803
      %v868 = vpack.c.bf16 %v804, %v804
      %v869 = vpack.c.bf16 %v805, %v805
      %v870 = vpack.c.bf16 %v806, %v806
      %v871 = vpack.c.bf16 %v807, %v807
      %v872 = vpack.c.bf16 %v808, %v808
      %v873 = vpack.c.bf16 %v809, %v809
      %v874 = vpack.c.bf16 %v810, %v810
      %v875 = vpack.c.bf16 %v811, %v811
      %v876 = vpack.c.bf16 %v812, %v812
      %v877 = vpack.c.bf16 %v813, %v813
      %v878 = vpack.c.bf16 %v814, %v814
      %v879 = vpack.c.bf16 %v815, %v815
      %v880 = vpack.c.bf16 %v816, %v816
      %v881 = vpack.c.bf16 %v817, %v817
      %v882 = vpack.c.bf16 %v818, %v818
      %v883 = vpack.c.bf16 %v819, %v819
      %v884 = vpack.c.bf16 %v820, %v820
      %v885 = vpack.c.bf16 %v821, %v821
      %v886 = vpack.c.bf16 %v822, %v822
      %v887 = vpack.c.bf16 %v823, %v823
      %v888 = vpack.c.bf16 %v824, %v824
      %v889 = vpack.c.bf16 %v825, %v825
      %v890 = vpack.c.bf16 %v826, %v826
      %v891 = vpack.c.bf16 %v827, %v827
      %v892 = vpack.c.bf16 %v828, %v828
      %v893 = vpack.c.bf16 %v829, %v829
      %v894 = vpack.c.bf16 %v830, %v830
      %v895 = vpack.c.bf16 %v831, %v831
      %v896 = vpack.c.bf16 %v832, %v832
      %v897 = vpack.c.bf16 %v833, %v833
      %v898 = vpack.c.bf16 %v834, %v834
      %v899 = vpack.c.bf16 %v835, %v835
      %v900 = vpack.c.bf16 %v836, %v836
      %v901 = vpack.c.bf16 %v837, %v837
      %v902 = vpack.c.bf16 %v838, %v838
      %v903 = vpack.c.bf16 %v839, %v839
      %v904 = vpack.c.bf16 %v840, %v840
      %v905 = vpack.c.bf16 %v841, %v841
      %v906 = vpack.c.bf16 %v842, %v842
      %v907 = vpack.c.bf16 %v843, %v843
      %v908 = vpack.c.bf16 %v844, %v844
      %v909 = vpack.c.bf16 %v845, %v845
      %v910 = vpack.c.bf16 %v846, %v846
      %v911 = vpack.c.bf16 %v847, %v847
      %v912 = vpack.c.bf16 %v848, %v848
      %v913 = vpack.c.bf16 %v849, %v849
      %v914 = vpack.c.bf16 %v850, %v850
      %v915 = vpack.c.bf16 %v851, %v851
      %v916 = vpack.c.bf16 %v852, %v852
      %v917 = vpack.c.bf16 %v853, %v853
      %v918 = vpack.c.bf16 %v854, %v854
      %v919 = vpack.c.bf16 %v855, %v855
      %v920 = vpack.c.bf16 %v856, %v856
      %v921 = vpack.c.bf16 %v857, %v857
      %v922 = vpack.c.bf16 %v858, %v858
      %v923 = vpack.c.bf16 %v859, %v859
      %924 = vst [vmem:[#allocation8] sm:$0xf] %v860
      %925 = vst [vmem:[#allocation8 + $0x4] sm:$0xf] %v861
      %926 = vst [vmem:[#allocation8 + $0x8] sm:$0xf] %v862
      %927 = vst [vmem:[#allocation8 + $0xc] sm:$0xf] %v863
      %928 = vst [vmem:[#allocation8 + $0x10] sm:$0xf] %v864
      %929 = vst [vmem:[#allocation8 + $0x14] sm:$0xf] %v865
      %930 = vst [vmem:[#allocation8 + $0x18] sm:$0xf] %v866
      %931 = vst [vmem:[#allocation8 + $0x1c] sm:$0xf] %v867
      %932 = vst [vmem:[#allocation8 + $0x20] sm:$0xf] %v868
      %933 = vst [vmem:[#allocation8 + $0x24] sm:$0xf] %v869
      %934 = vst [vmem:[#allocation8 + $0x28] sm:$0xf] %v870
      %935 = vst [vmem:[#allocation8 + $0x2c] sm:$0xf] %v871
      %936 = vst [vmem:[#allocation8 + $0x30] sm:$0xf] %v872
      %937 = vst [vmem:[#allocation8 + $0x34] sm:$0xf] %v873
      %938 = vst [vmem:[#allocation8 + $0x38] sm:$0xf] %v874
      %939 = vst [vmem:[#allocation8 + $0x3c] sm:$0xf] %v875
      %940 = vst [vmem:[#allocation8 + $0x40] sm:$0xf] %v876
      %941 = vst [vmem:[#allocation8 + $0x44] sm:$0xf] %v877
      %942 = vst [vmem:[#allocation8 + $0x48] sm:$0xf] %v878
      %943 = vst [vmem:[#allocation8 + $0x4c] sm:$0xf] %v879
      %944 = vst [vmem:[#allocation8 + $0x50] sm:$0xf] %v880
      %945 = vst [vmem:[#allocation8 + $0x54] sm:$0xf] %v881
      %946 = vst [vmem:[#allocation8 + $0x58] sm:$0xf] %v882
      %947 = vst [vmem:[#allocation8 + $0x5c] sm:$0xf] %v883
      %948 = vst [vmem:[#allocation8 + $0x60] sm:$0xf] %v884
      %949 = vst [vmem:[#allocation8 + $0x64] sm:$0xf] %v885
      %950 = vst [vmem:[#allocation8 + $0x68] sm:$0xf] %v886
      %951 = vst [vmem:[#allocation8 + $0x6c] sm:$0xf] %v887
      %952 = vst [vmem:[#allocation8 + $0x70] sm:$0xf] %v888
      %953 = vst [vmem:[#allocation8 + $0x74] sm:$0xf] %v889
      %954 = vst [vmem:[#allocation8 + $0x78] sm:$0xf] %v890
      %955 = vst [vmem:[#allocation8 + $0x7c] sm:$0xf] %v891
      %956 = vst [vmem:[#allocation8 + $0x80] sm:$0xf] %v892
      %957 = vst [vmem:[#allocation8 + $0x84] sm:$0xf] %v893
      %958 = vst [vmem:[#allocation8 + $0x88] sm:$0xf] %v894
      %959 = vst [vmem:[#allocation8 + $0x8c] sm:$0xf] %v895
      %960 = vst [vmem:[#allocation8 + $0x90] sm:$0xf] %v896
      %961 = vst [vmem:[#allocation8 + $0x94] sm:$0xf] %v897
      %962 = vst [vmem:[#allocation8 + $0x98] sm:$0xf] %v898
      %963 = vst [vmem:[#allocation8 + $0x9c] sm:$0xf] %v899
      %964 = vst [vmem:[#allocation8 + $0xa0] sm:$0xf] %v900
      %965 = vst [vmem:[#allocation8 + $0xa4] sm:$0xf] %v901
      %966 = vst [vmem:[#allocation8 + $0xa8] sm:$0xf] %v902
      %967 = vst [vmem:[#allocation8 + $0xac] sm:$0xf] %v903
      %968 = vst [vmem:[#allocation8 + $0xb0] sm:$0xf] %v904
      %969 = vst [vmem:[#allocation8 + $0xb4] sm:$0xf] %v905
      %970 = vst [vmem:[#allocation8 + $0xb8] sm:$0xf] %v906
      %971 = vst [vmem:[#allocation8 + $0xbc] sm:$0xf] %v907
      %972 = vst [vmem:[#allocation8 + $0xc0] sm:$0xf] %v908
      %973 = vst [vmem:[#allocation8 + $0xc4] sm:$0xf] %v909
      %974 = vst [vmem:[#allocation8 + $0xc8] sm:$0xf] %v910
      %975 = vst [vmem:[#allocation8 + $0xcc] sm:$0xf] %v911
      %976 = vst [vmem:[#allocation8 + $0xd0] sm:$0xf] %v912
      %977 = vst [vmem:[#allocation8 + $0xd4] sm:$0xf] %v913
      %978 = vst [vmem:[#allocation8 + $0xd8] sm:$0xf] %v914
      %979 = vst [vmem:[#allocation8 + $0xdc] sm:$0xf] %v915
      %980 = vst [vmem:[#allocation8 + $0xe0] sm:$0xf] %v916
      %981 = vst [vmem:[#allocation8 + $0xe4] sm:$0xf] %v917
      %982 = vst [vmem:[#allocation8 + $0xe8] sm:$0xf] %v918
      %983 = vst [vmem:[#allocation8 + $0xec] sm:$0xf] %v919
      %984 = vst [vmem:[#allocation8 + $0xf0] sm:$0xf] %v920
      %985 = vst [vmem:[#allocation8 + $0xf4] sm:$0xf] %v921
      %986 = vst [vmem:[#allocation8 + $0xf8] sm:$0xf] %v922
      %987 = vst [vmem:[#allocation8 + $0xfc] sm:$0xf] %v923
    $region25: #{tpu_custom_call.1} parent=1 // pred_fallthru
      _
    // Predicated region
    $region26: #{tpu_custom_call.1} parent=1 // pred_check
      _
    $region27: #{tpu_custom_call.1} parent=1 // pred_check_branch
      %989 = sbr.rel (0) target = $region29
    $region28: #{tpu_custom_call.1} parent=1 // pred_region
      %991 = vsyncadd [#allocation5], 0
      %s992 = sshll.u32 [#allocation8], 4
      %s993 = int_to_ptr.vmem [resolvable:$true] %s992
      %s994 = sshll.u32 %s2, 4
      %s995 = int_to_ptr.hbm [resolvable:$true] %s994
      %1000 = dma.vmem_to_hbm [thread:$0]  %s993, 4096, %s995, [#allocation5], 64, 64, 4
    $region29: #{tpu_custom_call.1} parent=1 // pred_fallthru
      _
    // Predicated region
    $region30: #{tpu_custom_call.1} parent=1 // pred_check
      _
    $region31: #{tpu_custom_call.1} parent=1 // pred_check_branch
      %1002 = sbr.rel (0) target = $region33
    $region32: #{tpu_custom_call.1} parent=1 // pred_region
      %1004 = dma.done [#allocation5], 4096
    $region33: #{tpu_custom_call.1} parent=1 // pred_fallthru
      _
    %1005 = vsyncpa [#allocation4], 1
    %1006 = vsyncpa [#allocation7], 1
    %1007 = vsyncpa [#allocation5], 1

</llo_original>
